<compile_context>
chip_gen: v5e
topology: v5e:2x2
jax: 0.10.0
libtpu: 0.0.40
codegen_flags: <defaults>
</compile_context>

<pallas_src>
import jax
import jax.numpy as jnp
from jax import lax
from jax.experimental import pallas as pl
from jax.experimental.pallas import tpu as pltpu


def _se_kernel(x_ref, w1_ref, b1_ref, w2_ref, b2_ref, o_ref):
    # x_ref: (Bt, C, HW) block of flattened images.
    x = x_ref[...].astype(jnp.float32)

    # Global average pool over the (flattened) spatial axis -> (Bt, C).
    pooled = jnp.mean(x, axis=-1)

    # Linear(C -> hidden) + ReLU.  w1_ref is (hidden, C) (torch layout, lane-dense);
    # contract over C.
    h = lax.dot_general(
        pooled, w1_ref[...],
        dimension_numbers=(((1,), (1,)), ((), ())),
        preferred_element_type=jnp.float32)
    h = jnp.maximum(h + b1_ref[...], 0.0)

    # Linear(hidden -> C) + Sigmoid.  w2_ref is (hidden, C) (torch W2 transposed).
    s = jnp.dot(h, w2_ref[...], preferred_element_type=jnp.float32) + b2_ref[...]
    gate = jax.nn.sigmoid(s)                       # (Bt, C)

    # Rescale: (Bt, C, HW) * (Bt, C, 1)
    o_ref[...] = (x * gate[:, :, None]).astype(o_ref.dtype)


def _pick_block_b(B, C, HW, dtype_bytes=4,
                  vmem_budget_bytes=12 << 20, target_blocks=4):
    """Pick the batch tile Bt.

    Constraints:
      * double-buffered (input + output) blocks fit in vmem_budget_bytes
      * keep at least min(B, target_blocks) grid steps so both TensorCores on
        v7x get work.
    """
    per_elem = C * HW * dtype_bytes * 4          # (in + out) x 2 pipeline buffers
    bt_vmem = max(1, vmem_budget_bytes // max(per_elem, 1))
    n_blocks = min(B, target_blocks)
    bt_mc = max(1, -(-B // n_blocks))            # cdiv(B, n_blocks)
    return max(1, min(B, bt_vmem, bt_mc))


def squeeze_and_excitation(x, w1, b1, w2, b2, *, block_b=None):
    """Squeeze-and-Excitation forward.

    x : (B, C, H, W) float32
    w1: (hidden, C)  -- torch Linear(C, hidden).weight layout
    b1: (hidden,)    -- torch Linear(C, hidden).bias
    w2: (C, hidden)  -- torch Linear(hidden, C).weight layout
    b2: (C,)         -- torch Linear(hidden, C).bias
    """
    B, C, H, W = x.shape
    HW = H * W
    hidden = w1.shape[0]

    # Lane-dense flatten: (B, C, H, W) -> (B, C, H*W).
    x_flat = x.reshape(B, C, HW)

    # Kernel-friendly parameter layouts (lane dim = C everywhere it matters).
    w1_k = w1                        # (hidden, C)
    b1_k = b1.reshape(1, hidden)
    w2_k = w2.T                      # (hidden, C)
    b2_k = b2.reshape(1, C)

    bt = block_b if block_b is not None else _pick_block_b(B, C, HW)
    n_blocks = pl.cdiv(B, bt)
    b_pad = n_blocks * bt
    if b_pad != B:
        # Zero-pad the batch: padded rows flow harmlessly through the MLP
        # (pooled = 0 -> finite gate) and are sliced off below.
        x_flat = jnp.pad(x_flat, ((0, b_pad - B), (0, 0), (0, 0)))

    out = pl.pallas_call(
        _se_kernel,
        out_shape=jax.ShapeDtypeStruct((b_pad, C, HW), x.dtype),
        grid_spec=pltpu.PrefetchScalarGridSpec(
            num_scalar_prefetch=0,
            grid=(n_blocks,),
            in_specs=[
                pl.BlockSpec((bt, C, HW), lambda b: (b, 0, 0)),
                pl.BlockSpec((hidden, C), lambda b: (0, 0)),
                pl.BlockSpec((1, hidden), lambda b: (0, 0)),
                pl.BlockSpec((hidden, C), lambda b: (0, 0)),
                pl.BlockSpec((1, C), lambda b: (0, 0)),
            ],
            out_specs=pl.BlockSpec((bt, C, HW), lambda b: (b, 0, 0)),
        ),
        compiler_params=pltpu.CompilerParams(
            dimension_semantics=("parallel",)),
    )(x_flat, w1_k, b1_k, w2_k, b2_k)

    if b_pad != B:
        out = out[:B]
    return out.reshape(B, C, H, W)


def _reference(x, w1, b1, w2, b2):
    pooled = jnp.mean(x, axis=(2, 3))                       # (B, C)
    h = jnp.maximum(pooled @ w1.T + b1, 0.0)                # (B, hidden)
    s = jax.nn.sigmoid(h @ w2.T + b2)                       # (B, C)
    return x * s[:, :, None, None]


if __name__ == "__main__":
    # Shapes consistent with the module: channels divisible by r=16.
    B, C, H, W = 2, 32, 16, 16
    r = 16
    hidden = C // r  # = 2

    key = jax.random.PRNGKey(0)
    kx, k1, k2, k3, k4 = jax.random.split(key, 5)

    x = jax.random.normal(kx, (B, C, H, W), dtype=jnp.float32)

    # Torch-layout parameters: Linear(C, hidden).weight is (hidden, C), etc.
    w1 = jax.random.normal(k1, (hidden, C), dtype=jnp.float32) * 0.1
    b1 = jax.random.normal(k2, (hidden,), dtype=jnp.float32) * 0.1
    w2 = jax.random.normal(k3, (C, hidden), dtype=jnp.float32) * 0.1
    b2 = jax.random.normal(k4, (C,), dtype=jnp.float32) * 0.1

    out = squeeze_and_excitation(x, w1, b1, w2, b2)
    out = jax.block_until_ready(out)

    ref = _reference(x, w1, b1, w2, b2)
    assert out.shape == (B, C, H, W)
    assert jnp.allclose(out, ref, atol=1e-5, rtol=1e-5), "mismatch vs reference"

    print("KERNEL_OK")
</pallas_src>

<mosaic_0001>
module attributes {stable_mosaic.version = 11 : i64} {
  func.func @_se_kernel(%arg0: i32, %arg1: memref<1x32x256xf32, #tpu.memory_space<vmem>>, %arg2: memref<2x32xf32, #tpu.memory_space<vmem>>, %arg3: memref<1x2xf32, #tpu.memory_space<vmem>>, %arg4: memref<2x32xf32, #tpu.memory_space<vmem>>, %arg5: memref<1x32xf32, #tpu.memory_space<vmem>>, %arg6: memref<1x32x256xf32, #tpu.memory_space<vmem>>) attributes {dimension_semantics = [#tpu.dimension_semantics<parallel>], iteration_bounds = array<i64: 2>, scalar_prefetch = 0 : i64, scratch_operands = 0 : i64, tpu.core_type = #tpu.core_type<tc>, window_params = [{transform_indices = @transform_0, window_bounds = array<i64: 1, 32, 256>}, {pipeline_mode = #tpu.pipeline_mode<synchronous>, transform_indices = @transform_1, window_bounds = array<i64: 2, 32>}, {pipeline_mode = #tpu.pipeline_mode<synchronous>, transform_indices = @transform_2, window_bounds = array<i64: 1, 2>}, {pipeline_mode = #tpu.pipeline_mode<synchronous>, transform_indices = @transform_3, window_bounds = array<i64: 2, 32>}, {pipeline_mode = #tpu.pipeline_mode<synchronous>, transform_indices = @transform_4, window_bounds = array<i64: 1, 32>}, {transform_indices = @transform_5, window_bounds = array<i64: 1, 32, 256>}]} {
    %c0 = arith.constant 0 : index
    %c0_0 = arith.constant 0 : index
    %c0_1 = arith.constant 0 : index
    %0 = vector.load %arg1[%c0, %c0_0, %c0_1] : memref<1x32x256xf32, #tpu.memory_space<vmem>>, vector<1x32x256xf32>
    %cst = arith.constant dense<0.000000e+00> : vector<1x32xf32>
    %1 = vector.multi_reduction <add>, %0, %cst [2] : vector<1x32x256xf32> to vector<1x32xf32>
    %cst_2 = arith.constant 2.560000e+02 : f32
    %2 = vector.broadcast %cst_2 : f32 to vector<1x32xf32>
    %3 = arith.divf %1, %2 : vector<1x32xf32>
    %c0_3 = arith.constant 0 : index
    %c0_4 = arith.constant 0 : index
    %4 = vector.load %arg2[%c0_3, %c0_4] : memref<2x32xf32, #tpu.memory_space<vmem>>, vector<2x32xf32>
    %cst_5 = arith.constant dense<0.000000e+00> : vector<1x2xf32>
    %5 = tpu.matmul %3, %4, %cst_5 {dimension_numbers = #tpu.dot_dimension_numbers<[1], [1], [0], [0], [0, 0, 1, 0], [], []>} : vector<1x32xf32>, vector<2x32xf32>, vector<1x2xf32> -> vector<1x2xf32>
    %c0_6 = arith.constant 0 : index
    %c0_7 = arith.constant 0 : index
    %6 = vector.load %arg3[%c0_6, %c0_7] : memref<1x2xf32, #tpu.memory_space<vmem>>, vector<1x2xf32>
    %7 = arith.addf %5, %6 : vector<1x2xf32>
    %cst_8 = arith.constant 0.000000e+00 : f32
    %8 = vector.broadcast %cst_8 : f32 to vector<1x2xf32>
    %9 = arith.maximumf %7, %8 : vector<1x2xf32>
    %c0_9 = arith.constant 0 : index
    %c0_10 = arith.constant 0 : index
    %10 = vector.load %arg4[%c0_9, %c0_10] : memref<2x32xf32, #tpu.memory_space<vmem>>, vector<2x32xf32>
    %cst_11 = arith.constant dense<0.000000e+00> : vector<1x32xf32>
    %11 = tpu.matmul %9, %10, %cst_11 {dimension_numbers = #tpu.dot_dimension_numbers<[1], [0], [0], [1], [0, 0, 1, 1], [], []>} : vector<1x2xf32>, vector<2x32xf32>, vector<1x32xf32> -> vector<1x32xf32>
    %c0_12 = arith.constant 0 : index
    %c0_13 = arith.constant 0 : index
    %12 = vector.load %arg5[%c0_12, %c0_13] : memref<1x32xf32, #tpu.memory_space<vmem>>, vector<1x32xf32>
    %13 = arith.addf %11, %12 : vector<1x32xf32>
    %14 = arith.negf %13 : vector<1x32xf32>
    %15 = math.exp %14 : vector<1x32xf32>
    %cst_14 = arith.constant 1.000000e+00 : f32
    %16 = vector.broadcast %cst_14 : f32 to vector<1x32xf32>
    %17 = arith.addf %16, %15 : vector<1x32xf32>
    %18 = arith.divf %16, %17 : vector<1x32xf32>
    %19 = vector.shape_cast %18 : vector<1x32xf32> to vector<1x32x1xf32>
    %20 = vector.broadcast %19 : vector<1x32x1xf32> to vector<1x32x256xf32>
    %21 = arith.mulf %0, %20 : vector<1x32x256xf32>
    %c0_15 = arith.constant 0 : index
    %c0_16 = arith.constant 0 : index
    %c0_17 = arith.constant 0 : index
    %22 = vector.load %arg6[%c0_15, %c0_16, %c0_17] : memref<1x32x256xf32, #tpu.memory_space<vmem>>, vector<1x32x256xf32>
    tpu.vector_store %arg6[%c0_15, %c0_16, %c0_17], %21 {strides = array<i32>} : memref<1x32x256xf32, #tpu.memory_space<vmem>>, vector<1x32x256xf32>,
    return
  }
  func.func @transform_0(%arg0: i32) -> (i32, i32, i32) {
    %c0_i32 = arith.constant 0 : i32
    %c0_i32_0 = arith.constant 0 : i32
    %c0_i32_1 = arith.constant 0 : i32
    return %arg0, %c0_i32, %c0_i32_0 : i32, i32, i32
  }
  func.func @transform_1(%arg0: i32) -> (i32, i32) {
    %c0_i32 = arith.constant 0 : i32
    %c0_i32_0 = arith.constant 0 : i32
    %c0_i32_1 = arith.constant 0 : i32
    return %c0_i32, %c0_i32_0 : i32, i32
  }
  func.func @transform_2(%arg0: i32) -> (i32, i32) {
    %c0_i32 = arith.constant 0 : i32
    %c0_i32_0 = arith.constant 0 : i32
    %c0_i32_1 = arith.constant 0 : i32
    return %c0_i32, %c0_i32_0 : i32, i32
  }
  func.func @transform_3(%arg0: i32) -> (i32, i32) {
    %c0_i32 = arith.constant 0 : i32
    %c0_i32_0 = arith.constant 0 : i32
    %c0_i32_1 = arith.constant 0 : i32
    return %c0_i32, %c0_i32_0 : i32, i32
  }
  func.func @transform_4(%arg0: i32) -> (i32, i32) {
    %c0_i32 = arith.constant 0 : i32
    %c0_i32_0 = arith.constant 0 : i32
    %c0_i32_1 = arith.constant 0 : i32
    return %c0_i32, %c0_i32_0 : i32, i32
  }
  func.func @transform_5(%arg0: i32) -> (i32, i32, i32) {
    %c0_i32 = arith.constant 0 : i32
    %c0_i32_0 = arith.constant 0 : i32
    %c0_i32_1 = arith.constant 0 : i32
    return %arg0, %c0_i32, %c0_i32_0 : i32, i32, i32
  }
}

</mosaic_0001>

<llo_original>
// kernel: tpu_custom_call.1
$region0: #{tpu_custom_call.1}
  #allocation0 [shape = 'u32[]', space=smem, size = 0x4, offset = 0x4, fixed_abs, tag = 'smem constant byte address 0x4 - core index']
  #allocation1 [shape = 'u32[72,128]{1,0:T(1,128)}', space=vmem, size = 0x9000, scoped, tag = 'internal scratch']
  %s0 = inlined_call_operand.hbm [shape: f32[2,32,256], index: 0, kind: input, shape index: {}]
  %s1 = inlined_call_operand.hbm [shape: f32[2,32], index: 1, kind: input, shape index: {}]
  %s2 = inlined_call_operand.hbm [shape: f32[1,2], index: 2, kind: input, shape index: {}]
  %s3 = inlined_call_operand.vmem [shape: f32[2,32], index: 3, kind: input, shape index: {}]
  %s4 = inlined_call_operand.vmem [shape: f32[1,32], index: 4, kind: input, shape index: {}]
  %s5 = inlined_call_operand.hbm [shape: f32[2,32,256], index: 5, kind: output, shape index: {}]
  %s6 = sld [smem:[#allocation0]]
  $region65: #{tpu_custom_call.1} parent=0
    _
  %s8 = ssub.s32 1, %s6
  %s9 = scalar_select 0, %s8, %s6
  $region1: #{tpu_custom_call.1} parent=0
    #allocation2 [shape = 'u8[65536]{0}', space=vmem, size = 0x10000, scoped, tag = 'input window, operand 0']
    #allocation3 [shape = 's32[2]{0}', space=sflag, size = 0x8, scoped, tag = 'scoped memory for tpu_custom_call.1']
    #allocation4 [shape = 's32[2]{0}', space=sflag, size = 0x8, scoped, tag = 'scoped memory for tpu_custom_call.1']
    #allocation5 [shape = 'u8[1024]{0}', space=vmem, size = 0x400, scoped, tag = 'input window, operand 1, single buffered']
    #allocation6 [shape = 's32[1]{0}', space=sflag, size = 0x4, scoped, tag = 'scoped memory for tpu_custom_call.1']
    #allocation7 [shape = 'u8[512]{0}', space=vmem, size = 0x400, scoped, tag = 'input window, operand 2, single buffered']
    #allocation8 [shape = 'u8[65536]{0}', space=vmem, size = 0x10000, scoped, tag = 'output window, operand 0']
    %10 = vsyncpa [#allocation3], 0
    %s11 = scalar_lea.sflag [#allocation3], 1
    %12 = vsyncpa %s11, 0
    %13 = vsyncpa [#allocation6], 0
    %14 = vsyncpa [#allocation4], 0
    %s15 = scalar_lea.sflag [#allocation4], 1
    %16 = vsyncpa %s15, 0
    loop: start=0, step=1, limit=4
    $region2: #{tpu_custom_call.1} parent=1 // loop_pre_header
      _
    $region3: #{tpu_custom_call.1} parent=1 // loop_header
      %s18 = sphi 0, %s22
      %p19 = scmp.ge.s32.totalorder %s18, 4
      %s28 = sphi 0, %s30
      %s31 = sphi 0, %s28
      %s32 = sphi 0, %s31
      %s48 = sphi 0, %s32
      %s52 = sphi 0, %s52
      %s54 = sphi 0, %s52
      %s55 = sphi 0, %s54
      %s69 = sphi 0, %s55
      %s73 = sphi 0, %s73
      %s75 = sphi 0, %s73
      %s76 = sphi 0, %s75
      %s90 = sphi 0, %s76
      %s94 = sphi 0, %s94
      %s96 = sphi 0, %s94
      %s97 = sphi 0, %s96
      %s111 = sphi 0, %s97
      %s115 = sphi 0, %s115
      %s117 = sphi 0, %s115
      %s118 = sphi 0, %s117
      %s132 = sphi 0, %s118
      %s138 = sphi 0, %s140
      %s141 = sphi 0, %s138
      %s142 = sphi 0, %s141
      %s158 = sphi 0, %s142
    $region4: #{tpu_custom_call.1} parent=1 // loop_header_branch
      %21 = sbr.rel (%p19) target = $region8
    $region5: #{tpu_custom_call.1} parent=1 // loop_body
      %s23 = ssub.s32 %s18, 1
      %s24 = ssub.s32 %s18, 2
      %s25 = sadd.s32 %s18, 1
      %s26 = ssub.s32 %s18, %s25
      %p27 = scmp.eq.s32.totalorder %s26, 0
      %s29 = sadd.s32 %s28, 1
      %s30 = scalar_select %p27, %s28, %s29
      %p33 = pneg %p27
      %p34 = scmp.eq.s32.totalorder %s18, 1
      %p35 = por %p33, %p34
      %p36 = scmp.ne.s32.totalorder %s28, %s31
      %p37 = scmp.eq.s32.totalorder %s18, 0
      %p38 = por %p36, %p37
      %p39 = scmp.ne.s32.totalorder %s28, %s31
      %p40 = scmp.eq.s32.totalorder %s23, 1
      %p41 = por %p39, %p40
      %p42 = scmp.ne.s32.totalorder %s31, %s32
      %p43 = scmp.eq.s32.totalorder %s23, 0
      %p44 = por %p42, %p43
      %p45 = scmp.ne.s32.totalorder %s31, %s32
      %p46 = scmp.eq.s32.totalorder %s24, 1
      %p47 = por %p45, %p46
      %p49 = scmp.ne.s32.totalorder %s32, %s48
      %p50 = scmp.eq.s32.totalorder %s24, 0
      %p51 = por %p49, %p50
      %s53 = sadd.s32 %s52, 1
      %p56 = scmp.eq.s32.totalorder %s18, 1
      %p57 = scmp.ne.s32.totalorder %s52, %s54
      %p58 = scmp.eq.s32.totalorder %s18, 0
      %p59 = por %p57, %p58
      %p60 = scmp.ne.s32.totalorder %s52, %s54
      %p61 = scmp.eq.s32.totalorder %s23, 1
      %p62 = por %p60, %p61
      %p63 = scmp.ne.s32.totalorder %s54, %s55
      %p64 = scmp.eq.s32.totalorder %s23, 0
      %p65 = por %p63, %p64
      %p66 = scmp.ne.s32.totalorder %s54, %s55
      %p67 = scmp.eq.s32.totalorder %s24, 1
      %p68 = por %p66, %p67
      %p70 = scmp.ne.s32.totalorder %s55, %s69
      %p71 = scmp.eq.s32.totalorder %s24, 0
      %p72 = por %p70, %p71
      %s74 = sadd.s32 %s73, 1
      %p77 = scmp.eq.s32.totalorder %s18, 1
      %p78 = scmp.ne.s32.totalorder %s73, %s75
      %p79 = scmp.eq.s32.totalorder %s18, 0
      %p80 = por %p78, %p79
      %p81 = scmp.ne.s32.totalorder %s73, %s75
      %p82 = scmp.eq.s32.totalorder %s23, 1
      %p83 = por %p81, %p82
      %p84 = scmp.ne.s32.totalorder %s75, %s76
      %p85 = scmp.eq.s32.totalorder %s23, 0
      %p86 = por %p84, %p85
      %p87 = scmp.ne.s32.totalorder %s75, %s76
      %p88 = scmp.eq.s32.totalorder %s24, 1
      %p89 = por %p87, %p88
      %p91 = scmp.ne.s32.totalorder %s76, %s90
      %p92 = scmp.eq.s32.totalorder %s24, 0
      %p93 = por %p91, %p92
      %s95 = sadd.s32 %s94, 1
      %p98 = scmp.eq.s32.totalorder %s18, 1
      %p99 = scmp.ne.s32.totalorder %s94, %s96
      %p100 = scmp.eq.s32.totalorder %s18, 0
      %p101 = por %p99, %p100
      %p102 = scmp.ne.s32.totalorder %s94, %s96
      %p103 = scmp.eq.s32.totalorder %s23, 1
      %p104 = por %p102, %p103
      %p105 = scmp.ne.s32.totalorder %s96, %s97
      %p106 = scmp.eq.s32.totalorder %s23, 0
      %p107 = por %p105, %p106
      %p108 = scmp.ne.s32.totalorder %s96, %s97
      %p109 = scmp.eq.s32.totalorder %s24, 1
      %p110 = por %p108, %p109
      %p112 = scmp.ne.s32.totalorder %s97, %s111
      %p113 = scmp.eq.s32.totalorder %s24, 0
      %p114 = por %p112, %p113
      %s116 = sadd.s32 %s115, 1
      %p119 = scmp.eq.s32.totalorder %s18, 1
      %p120 = scmp.ne.s32.totalorder %s115, %s117
      %p121 = scmp.eq.s32.totalorder %s18, 0
      %p122 = por %p120, %p121
      %p123 = scmp.ne.s32.totalorder %s115, %s117
      %p124 = scmp.eq.s32.totalorder %s23, 1
      %p125 = por %p123, %p124
      %p126 = scmp.ne.s32.totalorder %s117, %s118
      %p127 = scmp.eq.s32.totalorder %s23, 0
      %p128 = por %p126, %p127
      %p129 = scmp.ne.s32.totalorder %s117, %s118
      %p130 = scmp.eq.s32.totalorder %s24, 1
      %p131 = por %p129, %p130
      %p133 = scmp.ne.s32.totalorder %s118, %s132
      %p134 = scmp.eq.s32.totalorder %s24, 0
      %p135 = por %p133, %p134
      %s136 = ssub.s32 %s18, %s25
      %p137 = scmp.eq.s32.totalorder %s136, 0
      %s139 = sadd.s32 %s138, 1
      %s140 = scalar_select %p137, %s138, %s139
      %p143 = pneg %p137
      %p144 = scmp.eq.s32.totalorder %s18, 1
      %p145 = por %p143, %p144
      %p146 = scmp.ne.s32.totalorder %s138, %s141
      %p147 = scmp.eq.s32.totalorder %s18, 0
      %p148 = por %p146, %p147
      %p149 = scmp.ne.s32.totalorder %s138, %s141
      %p150 = scmp.eq.s32.totalorder %s23, 1
      %p151 = por %p149, %p150
      %p152 = scmp.ne.s32.totalorder %s141, %s142
      %p153 = scmp.eq.s32.totalorder %s23, 0
      %p154 = por %p152, %p153
      %p155 = scmp.ne.s32.totalorder %s141, %s142
      %p156 = scmp.eq.s32.totalorder %s24, 1
      %p157 = por %p155, %p156
      %p159 = scmp.ne.s32.totalorder %s142, %s158
      %p160 = scmp.eq.s32.totalorder %s24, 0
      %p161 = por %p159, %p160
      %p162 = scmp.le.s32.totalorder 1, %s18
      %p163 = scmp.lt.s32.totalorder %s18, 3
      %p164 = pnand %p162, %p163
      %p165 = pneg %p164
      // Predicated region
      $region9: #{tpu_custom_call.1} parent=5 // pred_check
        _
      $region10: #{tpu_custom_call.1} parent=5 // pred_check_branch
        %167 = sbr.rel (%p164) target = $region12
      $region11: #{tpu_custom_call.1} parent=5 // pred_region
        %s168 = ssub.s32 %s18, 1
        // Predicated region
        $region13: #{tpu_custom_call.1} parent=11 // pred_check
          %p169 = pneg %p65
        $region14: #{tpu_custom_call.1} parent=11 // pred_check_branch
          %171 = sbr.rel (%p169) target = $region16
        $region15: #{tpu_custom_call.1} parent=11 // pred_region
          %173 = vsyncadd [#allocation6], 0
          %s175 = sshll.u32 %s1, 4
          %s176 = int_to_ptr.hbm [resolvable:$true] %s175
          %s177 = sshll.u32 [#allocation5], 4
          %s178 = int_to_ptr.vmem [resolvable:$true] %s177
          %180 = dma.hbm_to_vmem [thread:$0]  %s176, 32, %s178, [#allocation6]
        $region16: #{tpu_custom_call.1} parent=11 // pred_fallthru
          _
        // Predicated region
        $region17: #{tpu_custom_call.1} parent=11 // pred_check
          %p181 = pneg %p86
        $region18: #{tpu_custom_call.1} parent=11 // pred_check_branch
          %183 = sbr.rel (%p181) target = $region20
        $region19: #{tpu_custom_call.1} parent=11 // pred_region
          %185 = vsyncadd [#allocation6], 0
          %s187 = sshll.u32 %s2, 4
          %s188 = int_to_ptr.hbm [resolvable:$true] %s187
          %s189 = sshll.u32 [#allocation7], 4
          %s190 = int_to_ptr.vmem [resolvable:$true] %s189
          %192 = dma.hbm_to_vmem [thread:$0]  %s188, 16, %s190, [#allocation6]
        $region20: #{tpu_custom_call.1} parent=11 // pred_fallthru
          _
        // Predicated region
        $region21: #{tpu_custom_call.1} parent=11 // pred_check
          %p193 = pneg %p107
        $region22: #{tpu_custom_call.1} parent=11 // pred_check_branch
          %195 = sbr.rel (%p193) target = $region24
        $region23: #{tpu_custom_call.1} parent=11 // pred_region
          _
        $region24: #{tpu_custom_call.1} parent=11 // pred_fallthru
          _
        // Predicated region
        $region25: #{tpu_custom_call.1} parent=11 // pred_check
          %p196 = pneg %p128
        $region26: #{tpu_custom_call.1} parent=11 // pred_check_branch
          %198 = sbr.rel (%p196) target = $region28
        $region27: #{tpu_custom_call.1} parent=11 // pred_region
          _
        $region28: #{tpu_custom_call.1} parent=11 // pred_fallthru
          _
      $region12: #{tpu_custom_call.1} parent=5 // pred_fallthru
        _
      %p199 = scmp.lt.s32.totalorder %s18, 2
      // Predicated region
      $region29: #{tpu_custom_call.1} parent=5 // pred_check
        %p200 = pneg %p199
      $region30: #{tpu_custom_call.1} parent=5 // pred_check_branch
        %202 = sbr.rel (%p200) target = $region32
      $region31: #{tpu_custom_call.1} parent=5 // pred_region
        // Predicated region
        $region33: #{tpu_custom_call.1} parent=31 // pred_check
          %p203 = pneg %p38
        $region34: #{tpu_custom_call.1} parent=31 // pred_check_branch
          %205 = sbr.rel (%p203) target = $region36
        $region35: #{tpu_custom_call.1} parent=31 // pred_region
          %s206 = sand.u32 %s28, 1
          %s207 = scalar_lea.sflag [#allocation3], %s206
          %s208 = sand.u32 %s28, 1
          %s209 = smul.addr %s208, 64
          %s210 = scalar_lea.vmem [#allocation2], %s209
          %212 = vsyncadd %s207, 0
          %s213 = smul.addr %s18, 8
          %s214 = smul.addr %s213, 8
          %s215 = scalar_lea.hbm %s0, %s214
          %s216 = sshll.u32 %s215, 4
          %s217 = int_to_ptr.hbm [resolvable:$true] %s216
          %s218 = sshll.u32 %s210, 4
          %s219 = int_to_ptr.vmem [resolvable:$true] %s218
          %224 = dma.hbm_to_vmem [thread:$0]  %s217, 1024, %s219, %s207, 256, 256, 16
        $region36: #{tpu_custom_call.1} parent=31 // pred_fallthru
          _
      $region32: #{tpu_custom_call.1} parent=5 // pred_fallthru
        _
      %p225 = scmp.le.s32.totalorder 1, %s18
      %p226 = scmp.lt.s32.totalorder %s18, 3
      %p227 = pnand %p225, %p226
      %p228 = pneg %p227
      // Predicated region
      $region37: #{tpu_custom_call.1} parent=5 // pred_check
        _
      $region38: #{tpu_custom_call.1} parent=5 // pred_check_branch
        %230 = sbr.rel (%p227) target = $region40
      $region39: #{tpu_custom_call.1} parent=5 // pred_region
        %s231 = ssub.s32 %s18, 1
        %s232 = sand.u32 %s31, 1
        %s233 = scalar_lea.sflag [#allocation3], %s232
        %s234 = sand.u32 %s31, 1
        %s235 = smul.addr %s234, 64
        %s236 = scalar_lea.vmem [#allocation2], %s235
        // Predicated region
        $region41: #{tpu_custom_call.1} parent=39 // pred_check
          %p237 = pneg %p44
        $region42: #{tpu_custom_call.1} parent=39 // pred_check_branch
          %239 = sbr.rel (%p237) target = $region44
        $region43: #{tpu_custom_call.1} parent=39 // pred_region
          %241 = dma.done %s233, 1024
        $region44: #{tpu_custom_call.1} parent=39 // pred_fallthru
          _
        // Predicated region
        $region45: #{tpu_custom_call.1} parent=39 // pred_check
          %p242 = pneg %p65
        $region46: #{tpu_custom_call.1} parent=39 // pred_check_branch
          %244 = sbr.rel (%p242) target = $region48
        $region47: #{tpu_custom_call.1} parent=39 // pred_region
          %246 = dma.done [#allocation6], 32
        $region48: #{tpu_custom_call.1} parent=39 // pred_fallthru
          _
        // Predicated region
        $region49: #{tpu_custom_call.1} parent=39 // pred_check
          %p247 = pneg %p86
        $region50: #{tpu_custom_call.1} parent=39 // pred_check_branch
          %249 = sbr.rel (%p247) target = $region52
        $region51: #{tpu_custom_call.1} parent=39 // pred_region
          %251 = dma.done [#allocation6], 16
        $region52: #{tpu_custom_call.1} parent=39 // pred_fallthru
          _
        %s252 = sand.u32 %s31, 1
        %s253 = scalar_lea.sflag [#allocation3], %s252
        %s254 = sand.u32 %s31, 1
        %s255 = smul.addr %s254, 64
        %s256 = scalar_lea.vmem [#allocation2], %s255
        %p257 = pneg %p44
        %p258 = pneg %p41
        %p259 = pneg %p65
        %p260 = pneg %p62
        %p261 = pneg %p86
        %p262 = pneg %p83
        %p263 = pneg %p107
        %p264 = pneg %p104
        %p265 = pneg %p128
        %p266 = pneg %p125
        %p267 = pneg %p154
        %p268 = pneg %p151
        %s269 = sand.u32 %s141, 1
        %s270 = scalar_lea.sflag [#allocation4], %s269
        %s271 = sand.u32 %s141, 1
        %s272 = smul.addr %s271, 64
        %s273 = scalar_lea.vmem [#allocation8], %s272
        %v274 = vld [vmem:[%s236] sm:$0xff]
        %v275 = vld [vmem:[%s236 + $0x8] sm:$0xff]
        %v276 = vld [vmem:[%s236 + $0x10] sm:$0xff]
        %v277 = vld [vmem:[%s236 + $0x18] sm:$0xff]
        %v278 = vld [vmem:[%s236 + $0x20] sm:$0xff]
        %v279 = vld [vmem:[%s236 + $0x28] sm:$0xff]
        %v280 = vld [vmem:[%s236 + $0x30] sm:$0xff]
        %v281 = vld [vmem:[%s236 + $0x38] sm:$0xff]
        %v282 = vadd.f32 %v274, %v275
        %283 = vadd.xlane.f32.xlu0 %v282
        %v284 = vpop.xlane.xlu0 %283
        %v285 = vadd.f32 %v276, %v277
        %286 = vadd.xlane.f32.xlu0 %v285
        %v287 = vpop.xlane.xlu0 %286
        %v288 = vadd.f32 %v278, %v279
        %289 = vadd.xlane.f32.xlu0 %v288
        %v290 = vpop.xlane.xlu0 %289
        %v291 = vadd.f32 %v280, %v281
        %292 = vadd.xlane.f32.xlu0 %v291
        %v293 = vpop.xlane.xlu0 %292
        %v294 = vrcp.pop 256.0
        %v295 = vmul.f32 256.0, %v294
        %v296 = vsub.f32 1.0, %v295
        %v297 = vmul.f32 %v294, %v296
        %v298 = vadd.f32 %v294, %v297
        %vm299 = vweird.f32 %v294
        %v300 = vsel %vm299, %v294, %v298
        %v301 = vmul.f32 %v284, %v300
        %v302 = vmul.f32 %v287, %v300
        %v303 = vmul.f32 %v290, %v300
        %v304 = vmul.f32 %v293, %v300
        %v305 = vld [vmem:[#allocation5] sm:$0x3]
        %v306 = vld [vmem:[#allocation7] sm:$0x1]
        %v311 = vlaneseq
        %v312 = vand.u32 %v311, 127
        %v313 = vperm.slane %v301, %v312
        %v314 = vadd.s32 %v312, 4294967288
        %v315 = vperm.slane %v302, %v314
        %vm316 = vcmask 130112
        %v317 = vsel %vm316, %v315, %v313
        %v318 = vadd.s32 %v312, 4294967280
        %v319 = vperm.slane %v303, %v318
        %vm320 = vcmask 195712
        %v321 = vsel %vm320, %v319, %v317
        %v322 = vadd.s32 %v312, 4294967272
        %v323 = vperm.slane %v304, %v322
        %vm324 = vcmask 261312
        %v325 = vsel %vm324, %v323, %v321
        %vm326 = vcmask 261120
        %v327 = vsel %vm326, %v325, 0
        %v330 = vsel %vm326, %v305, 0
        %332 = vmatpush.xpose.msra.mxu0 0.0
        %333 = vmatpush.xpose.msra.mxu0 0.0
        %334 = vmatpush.xpose.msra.mxu0 0.0
        %335 = vmatpush.xpose.msra.mxu0 0.0
        %336 = vmatpush.xpose.msra.mxu0 0.0
        %337 = vmatpush.xpose.msra.mxu0 0.0
        %338 = vmatpush.xpose.msra.mxu0 0.0
        %339 = vmatpush.xpose.msra.mxu0 0.0
        %340 = vmatpush.xpose.msra.mxu0 0.0
        %341 = vmatpush.xpose.msra.mxu0 0.0
        %342 = vmatpush.xpose.msra.mxu0 0.0
        %343 = vmatpush.xpose.msra.mxu0 0.0
        %344 = vmatpush.xpose.msra.mxu0 0.0
        %345 = vmatpush.xpose.msra.mxu0 0.0
        %346 = vmatpush.xpose.msra.mxu0 0.0
        %347 = vmatpush.xpose.msra.mxu0 %v330
        %348 = vmatmul.f32.gmra.mxu0 %v327
        %v349 = vpop.f32.mrf.mxu0
        %v350 = vadd.f32 %v306, %v349
        %351 = vdwg.mxu0
        %v352 = vmax.f32 %v350, 0.0
        %v353 = vld [vmem:[%s3] sm:$0x3]
        %v354 = vld [vmem:[%s4] sm:$0x1]
        %vm355 = vcmask 15360
        %v357 = vsel %vm355, %v352, 0
        %vm359 = vcmask 1041408
        %v361 = vsel %vm359, %v353, 0
        %363 = vmatpush.msra.mxu0 0.0
        %364 = vmatpush.msra.mxu0 0.0
        %365 = vmatpush.msra.mxu0 0.0
        %366 = vmatpush.msra.mxu0 0.0
        %367 = vmatpush.msra.mxu0 0.0
        %368 = vmatpush.msra.mxu0 0.0
        %369 = vmatpush.msra.mxu0 0.0
        %370 = vmatpush.msra.mxu0 0.0
        %371 = vmatpush.msra.mxu0 0.0
        %372 = vmatpush.msra.mxu0 0.0
        %373 = vmatpush.msra.mxu0 0.0
        %374 = vmatpush.msra.mxu0 0.0
        %375 = vmatpush.msra.mxu0 0.0
        %376 = vmatpush.msra.mxu0 0.0
        %377 = vmatpush.msra.mxu0 0.0
        %378 = vmatpush.msra.mxu0 %v361
        %379 = vmatmul.f32.gmra.mxu0 %v357
        %v380 = vpop.f32.mrf.mxu0
        %v381 = vadd.f32 %v354, %v380
        %382 = vdwg.mxu0
        %v383 = vxor.u32 %v381, 2147483648
        %v384 = vmul.f32 %v383, 1.442695
        %v385 = vpow.pop %v384
        %v386 = vadd.f32 %v385, 1.0
        %v387 = vrcp.pop %v386
        %v388 = vmul.f32 %v386, %v387
        %v389 = vsub.f32 1.0, %v388
        %v390 = vmul.f32 %v387, %v389
        %v391 = vadd.f32 %v387, %v390
        %vm392 = vweird.f32 %v386
        %vm393 = vweird.f32 %v387
        %vm394 = vmor %vm392, %vm393
        %v395 = vsel %vm394, %v387, %v391
        %v396 = vand.u32 2147483647, %v386
        %vm397 = vcmp.eq.f32.partialorder %v396, 8.507059e+37
        %v398 = vand.u32 %v386, 2147483648
        %v399 = vor.u32 1.1754944e-38, %v398
        %v400 = vsel %vm397, %v399, %v395
        %v401 = vmul.f32 1.0, %v400
        %v402 = vperm.slane %v401, 0
        %v403 = vlaneseq
        %v404 = vshrl.u32 %v403, 7
        %406 = vset.pattern.permute.xlu0 %v404
        %407 = vperm.xlu0 %406, %v402
        %v408 = vpop.permute.xlu0 %407
        %v409 = vlaneseq
        %v410 = vshrl.u32 %v409, 7
        %v411 = vadd.s32 %v410, 8
        %412 = vset.pattern.permute.xlu0 %v411
        %413 = vperm.xlu0 %412, %v402
        %v414 = vpop.permute.xlu0 %413
        %v415 = vlaneseq
        %v416 = vshrl.u32 %v415, 7
        %v417 = vadd.s32 %v416, 16
        %418 = vset.pattern.permute.xlu0 %v417
        %419 = vperm.xlu0 %418, %v402
        %v420 = vpop.permute.xlu0 %419
        %v421 = vlaneseq
        %v422 = vshrl.u32 %v421, 7
        %v423 = vadd.s32 %v422, 24
        %424 = vset.pattern.permute.xlu0 %v423
        %425 = vperm.xlu0 %424, %v402
        %v426 = vpop.permute.xlu0 %425
        %v427 = vmul.f32 %v274, %v408
        %v428 = vmul.f32 %v275, %v408
        %v429 = vmul.f32 %v276, %v414
        %v430 = vmul.f32 %v277, %v414
        %v431 = vmul.f32 %v278, %v420
        %v432 = vmul.f32 %v279, %v420
        %v433 = vmul.f32 %v280, %v426
        %v434 = vmul.f32 %v281, %v426
        %435 = vst [vmem:[%s273] sm:$0xff] %v427
        %436 = vst [vmem:[%s273 + $0x8] sm:$0xff] %v428
        %437 = vst [vmem:[%s273 + $0x10] sm:$0xff] %v429
        %438 = vst [vmem:[%s273 + $0x18] sm:$0xff] %v430
        %439 = vst [vmem:[%s273 + $0x20] sm:$0xff] %v431
        %440 = vst [vmem:[%s273 + $0x28] sm:$0xff] %v432
        %441 = vst [vmem:[%s273 + $0x30] sm:$0xff] %v433
        %442 = vst [vmem:[%s273 + $0x38] sm:$0xff] %v434
        %s443 = sand.u32 %s141, 1
        %s444 = scalar_lea.sflag [#allocation4], %s443
        %s445 = sand.u32 %s141, 1
        %s446 = smul.addr %s445, 64
        %s447 = scalar_lea.vmem [#allocation8], %s446
        // Predicated region
        $region53: #{tpu_custom_call.1} parent=39 // pred_check
          %p448 = pneg %p151
        $region54: #{tpu_custom_call.1} parent=39 // pred_check_branch
          %450 = sbr.rel (%p448) target = $region56
        $region55: #{tpu_custom_call.1} parent=39 // pred_region
          %452 = vsyncadd %s444, 0
          %s453 = smul.addr %s23, 8
          %s454 = smul.addr %s453, 8
          %s455 = scalar_lea.hbm %s5, %s454
          %s456 = sshll.u32 %s447, 4
          %s457 = int_to_ptr.vmem [resolvable:$true] %s456
          %s458 = sshll.u32 %s455, 4
          %s459 = int_to_ptr.hbm [resolvable:$true] %s458
          %464 = dma.vmem_to_hbm [thread:$0]  %s457, 1024, %s459, %s444, 256, 256, 16
        $region56: #{tpu_custom_call.1} parent=39 // pred_fallthru
          _
      $region40: #{tpu_custom_call.1} parent=5 // pred_fallthru
        _
      %p465 = scmp.le.s32.totalorder 2, %s18
      // Predicated region
      $region57: #{tpu_custom_call.1} parent=5 // pred_check
        %p466 = pneg %p465
      $region58: #{tpu_custom_call.1} parent=5 // pred_check_branch
        %468 = sbr.rel (%p466) target = $region60
      $region59: #{tpu_custom_call.1} parent=5 // pred_region
        %s469 = ssub.s32 %s18, 2
        // Predicated region
        $region61: #{tpu_custom_call.1} parent=59 // pred_check
          %p470 = pneg %p157
        $region62: #{tpu_custom_call.1} parent=59 // pred_check_branch
          %472 = sbr.rel (%p470) target = $region64
        $region63: #{tpu_custom_call.1} parent=59 // pred_region
          %s473 = sand.u32 %s142, 1
          %s474 = scalar_lea.sflag [#allocation4], %s473
          %s475 = sand.u32 %s142, 1
          %s476 = smul.addr %s475, 64
          %s477 = scalar_lea.vmem [#allocation8], %s476
          %479 = dma.done %s474, 1024
        $region64: #{tpu_custom_call.1} parent=59 // pred_fallthru
          _
      $region60: #{tpu_custom_call.1} parent=5 // pred_fallthru
        _
    $region6: #{tpu_custom_call.1} parent=1 // loop_footer
      %s22 = sadd.s32 1, %s18
    $region7: #{tpu_custom_call.1} parent=1 // loop_footer_branch
      %17 = sbr.rel target = $region3
    $region8: #{tpu_custom_call.1} parent=1 // loop_exit
      _
    %480 = vsyncpa [#allocation3], 1
    %s481 = scalar_lea.sflag [#allocation3], 1
    %482 = vsyncpa %s481, 1
    %483 = vsyncpa [#allocation6], 1
    %484 = vsyncpa [#allocation4], 1
    %s485 = scalar_lea.sflag [#allocation4], 1
    %486 = vsyncpa %s485, 1

</llo_original>
